<compile_context>
chip_gen: v5e
topology: v5e:2x2
jax: 0.10.0
libtpu: 0.0.40
codegen_flags: <defaults>
</compile_context>

<pallas_src>
import jax
import jax.numpy as jnp
from jax.experimental import pallas as pl
from jax.experimental.pallas import tpu as pltpu

BN_EPS = 1e-5


def siamese_kernel(fp_ref, w1_ref, b1_ref, w2_ref, b2_ref, w3_ref, b3_ref, out_ref):
    """One batch tile (transposed layout: batch on lanes).

    fp_ref : (2*len_emb, TB) bf16  -- [fp1 ; fp2] transposed, batch on lanes
    w1_ref : (H, 2*len_emb)  bf16  -- nn_reg folded into final_reg Linear1, transposed
    b1_ref : (H, 1)          f32
    w2_ref : (H4, H)         bf16  -- final_reg Linear2 with BN1 folded in, transposed
    b2_ref : (H4, 1)         f32
    w3_ref : (H4, 1)         f32   -- final_reg Linear3 with BN2 folded in
    b3_ref : (1, 1)          f32
    out_ref: (1, TB)         f32   -- lane-dense output row
    """
    # Layer 1 (nn_reg + cat folded in) + ReLU.
    h1 = jnp.dot(w1_ref[...], fp_ref[...], preferred_element_type=jnp.float32)
    h1 = jnp.maximum(h1 + b1_ref[...], 0.0)

    # Layer 2 (BN1 folded in) + ReLU.  Feed the MXU bf16, keep epilogue f32.
    h2 = jnp.dot(w2_ref[...], h1.astype(jnp.bfloat16),
                 preferred_element_type=jnp.float32)
    h2 = jnp.maximum(h2 + b2_ref[...], 0.0)

    # Layer 3 (BN2 folded in): N=1 matmul replaced by VPU multiply + sublane reduce.
    out_ref[...] = jnp.sum(h2 * w3_ref[...], axis=0, keepdims=True) + b3_ref[...]


def fold_params(p):
    """One-time (trace-time) fold of nn_reg and eval-mode BatchNorms into 3 Linears."""
    A = p["wreg"].shape[1]
    w1a, w1b = p["w1"][:A], p["w1"][A:]

    # nn_reg (Linear only, no activation) folded into final_reg Linear1.
    wf1 = p["wreg"] @ w1a                                # (len_emb, H)
    wf2 = p["wreg"] @ w1b                                # (len_emb, H)
    bf1 = p["breg"] @ (w1a + w1b) + p["b1"]              # (1, H)
    wcat = jnp.concatenate([wf1, wf2], axis=0)           # (2*len_emb, H)

    # BN1 (eval) folded into Linear2.
    s1 = p["g1"] * jax.lax.rsqrt(p["v1"] + BN_EPS)       # (1, H)
    t1 = p["be1"] - p["m1"] * s1                         # (1, H)
    w2f = p["w2"] * s1.T                                 # (H, H4)
    b2f = p["b2"] + t1 @ p["w2"]                         # (1, H4)

    # BN2 (eval) folded into Linear3.
    s2 = p["g2"] * jax.lax.rsqrt(p["v2"] + BN_EPS)       # (1, H4)
    t2 = p["be2"] - p["m2"] * s2                         # (1, H4)
    w3f = p["w3"] * s2.T                                 # (H4, 1)
    b3f = p["b3"] + t2 @ p["w3"]                         # (1, 1)

    return {
        "w1t": wcat.T.astype(jnp.bfloat16),    # (H, 2*len_emb)  bf16 MXU operand
        "b1t": bf1.T,                          # (H, 1)          f32
        "w2t": w2f.T.astype(jnp.bfloat16),     # (H4, H)         bf16 MXU operand
        "b2t": b2f.T,                          # (H4, 1)         f32
        "w3c": w3f,                            # (H4, 1)         f32 (VPU reduce weight)
        "b3":  b3f,                            # (1, 1)          f32
    }


def siamese_forward(fp1, fp2, folded, *, tb=128):
    """Wrapper: transpose/pack activations (layout plumbing) and launch the kernel."""
    assert tb % 128 == 0, "batch tile must be lane-aligned (multiple of 128)"
    B, len_emb = fp1.shape
    b_pad = pl.cdiv(B, tb) * tb

    # Transposed, concatenated, batch-padded activation slab: (2*len_emb, B_pad) bf16.
    fp = jnp.concatenate([fp1, fp2], axis=1).T.astype(jnp.bfloat16)
    fp = jnp.pad(fp, ((0, 0), (0, b_pad - B)))

    w1t, b1t = folded["w1t"], folded["b1t"]
    w2t, b2t = folded["w2t"], folded["b2t"]
    w3c, b3 = folded["w3c"], folded["b3"]

    out = pl.pallas_call(
        siamese_kernel,
        out_shape=jax.ShapeDtypeStruct((1, b_pad), jnp.float32),
        grid=(b_pad // tb,),
        in_specs=[
            # Activations: tiled along the (lane-major) batch axis.
            pl.BlockSpec((2 * len_emb, tb), lambda i: (0, i)),
            # Weights / biases: constant index_map -> VMEM-resident across grid steps.
            pl.BlockSpec(w1t.shape, lambda i: (0, 0)),
            pl.BlockSpec(b1t.shape, lambda i: (0, 0)),
            pl.BlockSpec(w2t.shape, lambda i: (0, 0)),
            pl.BlockSpec(b2t.shape, lambda i: (0, 0)),
            pl.BlockSpec(w3c.shape, lambda i: (0, 0)),
            pl.BlockSpec(b3.shape, lambda i: (0, 0)),
        ],
        # Lane-dense (1, TB) output row (unmasked stores).
        out_specs=pl.BlockSpec((1, tb), lambda i: (0, i)),
        compiler_params=pltpu.CompilerParams(
            dimension_semantics=("parallel",),   # v7x: shard batch tiles across 2 TCs
        ),
    )(fp, w1t, b1t, w2t, b2t, w3c, b3)

    # Back to the PyTorch (B, 1) column.
    return out[0, :B][:, None]


def init_params(key, len_embedding, abstract_len_embedding, n_hidden_node):
    """PyTorch-Linear-style uniform init; Linear weights stored as (in, out).
    BatchNorm running stats / affine params are randomized (non-trivial) so the
    eval-mode BN fold is actually exercised by the correctness check."""
    h4 = n_hidden_node // 4
    keys = jax.random.split(key, 6)

    def linear(k, fan_in, fan_out):
        bound = float(fan_in) ** -0.5
        kw, kb = jax.random.split(k)
        w = jax.random.uniform(kw, (fan_in, fan_out), jnp.float32, -bound, bound)
        b = jax.random.uniform(kb, (1, fan_out), jnp.float32, -bound, bound)
        return w, b

    def batchnorm(k, n):
        kg, kb, km, kv = jax.random.split(k, 4)
        return (
            jax.random.uniform(kg, (1, n), jnp.float32, 0.5, 1.5),    # gamma
            0.1 * jax.random.normal(kb, (1, n), jnp.float32),          # beta
            0.1 * jax.random.normal(km, (1, n), jnp.float32),          # running mean
            jax.random.uniform(kv, (1, n), jnp.float32, 0.5, 1.5),     # running var
        )

    wreg, breg = linear(keys[0], len_embedding, abstract_len_embedding)
    w1, b1 = linear(keys[1], 2 * abstract_len_embedding, n_hidden_node)
    w2, b2 = linear(keys[2], n_hidden_node, h4)
    w3, b3 = linear(keys[3], h4, 1)
    g1, be1, m1, v1 = batchnorm(keys[4], n_hidden_node)
    g2, be2, m2, v2 = batchnorm(keys[5], h4)

    return {
        "wreg": wreg, "breg": breg,
        "w1": w1, "b1": b1,
        "g1": g1, "be1": be1, "m1": m1, "v1": v1,
        "w2": w2, "b2": b2,
        "g2": g2, "be2": be2, "m2": m2, "v2": v2,
        "w3": w3, "b3": b3,
    }


def siamese_reference(fp1, fp2, p):
    """Pure-JAX f32 reference of the original (unfolded) eval-mode forward."""
    a = fp1 @ p["wreg"] + p["breg"]
    b = fp2 @ p["wreg"] + p["breg"]
    x = jnp.concatenate([a, b], axis=1)
    h1 = jnp.maximum(x @ p["w1"] + p["b1"], 0.0)
    h1 = (h1 - p["m1"]) / jnp.sqrt(p["v1"] + BN_EPS) * p["g1"] + p["be1"]
    h2 = jnp.maximum(h1 @ p["w2"] + p["b2"], 0.0)
    h2 = (h2 - p["m2"]) / jnp.sqrt(p["v2"] + BN_EPS) * p["g2"] + p["be2"]
    return h2 @ p["w3"] + p["b3"]


if __name__ == "__main__":
    B = 8
    LEN_EMBEDDING = 64
    ABSTRACT_LEN = 16
    N_HIDDEN = 32

    root = jax.random.PRNGKey(0)
    k_fp1, k_fp2, k_params = jax.random.split(root, 3)

    fp1 = jax.random.normal(k_fp1, (B, LEN_EMBEDDING), jnp.float32)
    fp2 = jax.random.normal(k_fp2, (B, LEN_EMBEDDING), jnp.float32)
    params = init_params(k_params, LEN_EMBEDDING, ABSTRACT_LEN, N_HIDDEN)

    folded = fold_params(params)              # one-time fold (BN + nn_reg), plain JAX
    out = siamese_forward(fp1, fp2, folded)
    out = jax.block_until_ready(out)

    ref = siamese_reference(fp1, fp2, params)
    assert out.shape == (B, 1)
    # Tolerance covers bf16 MXU operands in the kernel vs the f32 reference.
    assert jnp.allclose(out, ref, atol=2e-2, rtol=2e-2), (
        "Pallas output mismatch vs JAX reference: "
        f"max abs diff {float(jnp.max(jnp.abs(out - ref)))}"
    )
    print("KERNEL_OK")
</pallas_src>

<mosaic_0001>
module attributes {stable_mosaic.version = 11 : i64} {
  func.func @siamese_kernel(%arg0: i32, %arg1: memref<128x128xbf16, #tpu.memory_space<vmem>>, %arg2: memref<32x128xbf16, #tpu.memory_space<vmem>>, %arg3: memref<32x1xf32, #tpu.memory_space<vmem>>, %arg4: memref<8x32xbf16, #tpu.memory_space<vmem>>, %arg5: memref<8x1xf32, #tpu.memory_space<vmem>>, %arg6: memref<8x1xf32, #tpu.memory_space<vmem>>, %arg7: memref<1x1xf32, #tpu.memory_space<vmem>>, %arg8: memref<1x128xf32, #tpu.memory_space<vmem>>) attributes {dimension_semantics = [#tpu.dimension_semantics<parallel>], iteration_bounds = array<i64: 1>, scalar_prefetch = 0 : i64, scratch_operands = 0 : i64, tpu.core_type = #tpu.core_type<tc>, window_params = [{transform_indices = @transform_0, window_bounds = array<i64: 128, 128>}, {pipeline_mode = #tpu.pipeline_mode<synchronous>, transform_indices = @transform_1, window_bounds = array<i64: 32, 128>}, {pipeline_mode = #tpu.pipeline_mode<synchronous>, transform_indices = @transform_2, window_bounds = array<i64: 32, 1>}, {pipeline_mode = #tpu.pipeline_mode<synchronous>, transform_indices = @transform_3, window_bounds = array<i64: 8, 32>}, {pipeline_mode = #tpu.pipeline_mode<synchronous>, transform_indices = @transform_4, window_bounds = array<i64: 8, 1>}, {pipeline_mode = #tpu.pipeline_mode<synchronous>, transform_indices = @transform_5, window_bounds = array<i64: 8, 1>}, {pipeline_mode = #tpu.pipeline_mode<synchronous>, transform_indices = @transform_6, window_bounds = array<i64: 1, 1>}, {transform_indices = @transform_7, window_bounds = array<i64: 1, 128>}]} {
    %c0 = arith.constant 0 : index
    %c0_0 = arith.constant 0 : index
    %0 = vector.load %arg2[%c0, %c0_0] : memref<32x128xbf16, #tpu.memory_space<vmem>>, vector<32x128xbf16>
    %c0_1 = arith.constant 0 : index
    %c0_2 = arith.constant 0 : index
    %1 = vector.load %arg1[%c0_1, %c0_2] : memref<128x128xbf16, #tpu.memory_space<vmem>>, vector<128x128xbf16>
    %cst = arith.constant dense<0.000000e+00> : vector<32x128xf32>
    %2 = tpu.matmul %0, %1, %cst {dimension_numbers = #tpu.dot_dimension_numbers<[1], [0], [0], [1], [0, 0, 1, 1], [], []>} : vector<32x128xbf16>, vector<128x128xbf16>, vector<32x128xf32> -> vector<32x128xf32>
    %c0_3 = arith.constant 0 : index
    %c0_4 = arith.constant 0 : index
    %3 = vector.load %arg3[%c0_3, %c0_4] : memref<32x1xf32, #tpu.memory_space<vmem>>, vector<32x1xf32>
    %4 = vector.broadcast %3 : vector<32x1xf32> to vector<32x128xf32>
    %5 = arith.addf %2, %4 : vector<32x128xf32>
    %cst_5 = arith.constant 0.000000e+00 : f32
    %6 = vector.broadcast %cst_5 : f32 to vector<32x128xf32>
    %7 = arith.maximumf %5, %6 : vector<32x128xf32>
    %c0_6 = arith.constant 0 : index
    %c0_7 = arith.constant 0 : index
    %8 = vector.load %arg4[%c0_6, %c0_7] : memref<8x32xbf16, #tpu.memory_space<vmem>>, vector<8x32xbf16>
    %9 = arith.truncf %7 : vector<32x128xf32> to vector<32x128xbf16>
    %cst_8 = arith.constant dense<0.000000e+00> : vector<8x128xf32>
    %10 = tpu.matmul %8, %9, %cst_8 {dimension_numbers = #tpu.dot_dimension_numbers<[1], [0], [0], [1], [0, 0, 1, 1], [], []>} : vector<8x32xbf16>, vector<32x128xbf16>, vector<8x128xf32> -> vector<8x128xf32>
    %c0_9 = arith.constant 0 : index
    %c0_10 = arith.constant 0 : index
    %11 = vector.load %arg5[%c0_9, %c0_10] : memref<8x1xf32, #tpu.memory_space<vmem>>, vector<8x1xf32>
    %12 = vector.broadcast %11 : vector<8x1xf32> to vector<8x128xf32>
    %13 = arith.addf %10, %12 : vector<8x128xf32>
    %cst_11 = arith.constant 0.000000e+00 : f32
    %14 = vector.broadcast %cst_11 : f32 to vector<8x128xf32>
    %15 = arith.maximumf %13, %14 : vector<8x128xf32>
    %c0_12 = arith.constant 0 : index
    %c0_13 = arith.constant 0 : index
    %16 = vector.load %arg6[%c0_12, %c0_13] : memref<8x1xf32, #tpu.memory_space<vmem>>, vector<8x1xf32>
    %17 = vector.broadcast %16 : vector<8x1xf32> to vector<8x128xf32>
    %18 = arith.mulf %15, %17 : vector<8x128xf32>
    %cst_14 = arith.constant dense<0.000000e+00> : vector<128xf32>
    %19 = vector.multi_reduction <add>, %18, %cst_14 [0] : vector<8x128xf32> to vector<128xf32>
    %20 = vector.shape_cast %19 : vector<128xf32> to vector<1x128xf32>
    %c0_15 = arith.constant 0 : index
    %c0_16 = arith.constant 0 : index
    %21 = vector.load %arg7[%c0_15, %c0_16] : memref<1x1xf32, #tpu.memory_space<vmem>>, vector<1x1xf32>
    %22 = vector.broadcast %21 : vector<1x1xf32> to vector<1x128xf32>
    %23 = arith.addf %20, %22 : vector<1x128xf32>
    %c0_17 = arith.constant 0 : index
    %c0_18 = arith.constant 0 : index
    %24 = vector.load %arg8[%c0_17, %c0_18] : memref<1x128xf32, #tpu.memory_space<vmem>>, vector<1x128xf32>
    tpu.vector_store %arg8[%c0_17, %c0_18], %23 {strides = array<i32>} : memref<1x128xf32, #tpu.memory_space<vmem>>, vector<1x128xf32>,
    return
  }
  func.func @transform_0(%arg0: i32) -> (i32, i32) {
    %c0_i32 = arith.constant 0 : i32
    %c0_i32_0 = arith.constant 0 : i32
    return %c0_i32, %arg0 : i32, i32
  }
  func.func @transform_1(%arg0: i32) -> (i32, i32) {
    %c0_i32 = arith.constant 0 : i32
    %c0_i32_0 = arith.constant 0 : i32
    %c0_i32_1 = arith.constant 0 : i32
    return %c0_i32, %c0_i32_0 : i32, i32
  }
  func.func @transform_2(%arg0: i32) -> (i32, i32) {
    %c0_i32 = arith.constant 0 : i32
    %c0_i32_0 = arith.constant 0 : i32
    %c0_i32_1 = arith.constant 0 : i32
    return %c0_i32, %c0_i32_0 : i32, i32
  }
  func.func @transform_3(%arg0: i32) -> (i32, i32) {
    %c0_i32 = arith.constant 0 : i32
    %c0_i32_0 = arith.constant 0 : i32
    %c0_i32_1 = arith.constant 0 : i32
    return %c0_i32, %c0_i32_0 : i32, i32
  }
  func.func @transform_4(%arg0: i32) -> (i32, i32) {
    %c0_i32 = arith.constant 0 : i32
    %c0_i32_0 = arith.constant 0 : i32
    %c0_i32_1 = arith.constant 0 : i32
    return %c0_i32, %c0_i32_0 : i32, i32
  }
  func.func @transform_5(%arg0: i32) -> (i32, i32) {
    %c0_i32 = arith.constant 0 : i32
    %c0_i32_0 = arith.constant 0 : i32
    %c0_i32_1 = arith.constant 0 : i32
    return %c0_i32, %c0_i32_0 : i32, i32
  }
  func.func @transform_6(%arg0: i32) -> (i32, i32) {
    %c0_i32 = arith.constant 0 : i32
    %c0_i32_0 = arith.constant 0 : i32
    %c0_i32_1 = arith.constant 0 : i32
    return %c0_i32, %c0_i32_0 : i32, i32
  }
  func.func @transform_7(%arg0: i32) -> (i32, i32) {
    %c0_i32 = arith.constant 0 : i32
    %c0_i32_0 = arith.constant 0 : i32
    return %c0_i32, %arg0 : i32, i32
  }
}

</mosaic_0001>

<llo_original>
// kernel: tpu_custom_call.1
$region0: #{tpu_custom_call.1}
  #allocation0 [shape = 'u32[]', space=smem, size = 0x4, offset = 0x4, fixed_abs, tag = 'smem constant byte address 0x4 - core index']
  #allocation1 [shape = 'u32[72,128]{1,0:T(1,128)}', space=vmem, size = 0x9000, scoped, tag = 'internal scratch']
  #allocation2 [shape = 'f32[1,1]{1,0:T(1,128)S(1)}', space=vmem, size = 0x200, scoped, tag = 'scoped memory for tpu_custom_call.1']
  %s0 = inlined_call_operand.hbm [shape: bf16[128,128], index: 0, kind: input, shape index: {}]
  %s1 = inlined_call_operand.vmem [shape: bf16[32,128], index: 1, kind: input, shape index: {}]
  %s2 = inlined_call_operand.vmem [shape: f32[32,1], index: 2, kind: input, shape index: {}]
  %s3 = inlined_call_operand.vmem [shape: bf16[8,32], index: 3, kind: input, shape index: {}]
  %s4 = inlined_call_operand.vmem [shape: f32[8,1], index: 4, kind: input, shape index: {}]
  %s5 = inlined_call_operand.vmem [shape: f32[8,1], index: 5, kind: input, shape index: {}]
  %s6 = inlined_call_operand.<no memory space> [shape: f32[1,1], index: 6, kind: input, shape index: {}]
  %s7 = inlined_call_operand.hbm [shape: f32[1,128], index: 7, kind: output, shape index: {}]
  %s8 = sld [smem:[#allocation0]]
  $region42: #{tpu_custom_call.1} parent=0
    _
  %s10 = ssub.s32 1, %s8
  %s11 = scalar_select 0, %s10, %s8
  %v12 = vstv %s6
  %13 = vst [vmem:[#allocation2] sm:$0x1] %v12
  $region1: #{tpu_custom_call.1} parent=0
    #allocation3 [shape = 'u8[32768]{0}', space=vmem, size = 0x8000, scoped, tag = 'input window, operand 0, single buffered']
    #allocation4 [shape = 's32[1]{0}', space=sflag, size = 0x4, scoped, tag = 'scoped memory for tpu_custom_call.1']
    #allocation5 [shape = 's32[1]{0}', space=sflag, size = 0x4, scoped, tag = 'scoped memory for tpu_custom_call.1']
    #allocation6 [shape = 'u8[512]{0}', space=vmem, size = 0x400, scoped, tag = 'output window, operand 0, single buffered']
    %14 = vsyncpa [#allocation4], 0
    %15 = vsyncpa [#allocation5], 0
    // Predicated region
    $region2: #{tpu_custom_call.1} parent=1 // pred_check
      _
    $region3: #{tpu_custom_call.1} parent=1 // pred_check_branch
      %17 = sbr.rel (0) target = $region5
    $region4: #{tpu_custom_call.1} parent=1 // pred_region
      %19 = vsyncadd [#allocation4], 0
      %s20 = sshll.u32 %s0, 4
      %s21 = int_to_ptr.hbm [resolvable:$true] %s20
      %s22 = sshll.u32 [#allocation3], 4
      %s23 = int_to_ptr.vmem [resolvable:$true] %s22
      %28 = dma.hbm_to_vmem [thread:$0]  %s21, 1024, %s23, [#allocation4], 64, 64, 4
    $region5: #{tpu_custom_call.1} parent=1 // pred_fallthru
      _
    // Predicated region
    $region6: #{tpu_custom_call.1} parent=1 // pred_check
      _
    $region7: #{tpu_custom_call.1} parent=1 // pred_check_branch
      %30 = sbr.rel (0) target = $region9
    $region8: #{tpu_custom_call.1} parent=1 // pred_region
      _
    $region9: #{tpu_custom_call.1} parent=1 // pred_fallthru
      _
    // Predicated region
    $region10: #{tpu_custom_call.1} parent=1 // pred_check
      _
    $region11: #{tpu_custom_call.1} parent=1 // pred_check_branch
      %32 = sbr.rel (0) target = $region13
    $region12: #{tpu_custom_call.1} parent=1 // pred_region
      _
    $region13: #{tpu_custom_call.1} parent=1 // pred_fallthru
      _
    // Predicated region
    $region14: #{tpu_custom_call.1} parent=1 // pred_check
      _
    $region15: #{tpu_custom_call.1} parent=1 // pred_check_branch
      %34 = sbr.rel (0) target = $region17
    $region16: #{tpu_custom_call.1} parent=1 // pred_region
      _
    $region17: #{tpu_custom_call.1} parent=1 // pred_fallthru
      _
    // Predicated region
    $region18: #{tpu_custom_call.1} parent=1 // pred_check
      _
    $region19: #{tpu_custom_call.1} parent=1 // pred_check_branch
      %36 = sbr.rel (0) target = $region21
    $region20: #{tpu_custom_call.1} parent=1 // pred_region
      _
    $region21: #{tpu_custom_call.1} parent=1 // pred_fallthru
      _
    // Predicated region
    $region22: #{tpu_custom_call.1} parent=1 // pred_check
      _
    $region23: #{tpu_custom_call.1} parent=1 // pred_check_branch
      %38 = sbr.rel (0) target = $region25
    $region24: #{tpu_custom_call.1} parent=1 // pred_region
      _
    $region25: #{tpu_custom_call.1} parent=1 // pred_fallthru
      _
    // Predicated region
    $region26: #{tpu_custom_call.1} parent=1 // pred_check
      _
    $region27: #{tpu_custom_call.1} parent=1 // pred_check_branch
      %40 = sbr.rel (0) target = $region29
    $region28: #{tpu_custom_call.1} parent=1 // pred_region
      _
    $region29: #{tpu_custom_call.1} parent=1 // pred_fallthru
      _
    // Predicated region
    $region30: #{tpu_custom_call.1} parent=1 // pred_check
      _
    $region31: #{tpu_custom_call.1} parent=1 // pred_check_branch
      %42 = sbr.rel (0) target = $region33
    $region32: #{tpu_custom_call.1} parent=1 // pred_region
      %44 = dma.done [#allocation4], 1024
    $region33: #{tpu_custom_call.1} parent=1 // pred_fallthru
      _
    %v46 = vld [vmem:[%s1] sm:$0xf]
    %v47 = vld [vmem:[%s1 + $0x4] sm:$0xf]
    %v48 = vld [vmem:[%s1 + $0x8] sm:$0xf]
    %v49 = vld [vmem:[%s1 + $0xc] sm:$0xf]
    %v50 = vld [vmem:[#allocation3] sm:$0xf]
    %v51 = vld [vmem:[#allocation3 + $0x4] sm:$0xf]
    %v52 = vld [vmem:[#allocation3 + $0x8] sm:$0xf]
    %v53 = vld [vmem:[#allocation3 + $0xc] sm:$0xf]
    %v54 = vld [vmem:[#allocation3 + $0x10] sm:$0xf]
    %v55 = vld [vmem:[#allocation3 + $0x14] sm:$0xf]
    %v56 = vld [vmem:[#allocation3 + $0x18] sm:$0xf]
    %v57 = vld [vmem:[#allocation3 + $0x1c] sm:$0xf]
    %v58 = vld [vmem:[#allocation3 + $0x20] sm:$0xf]
    %v59 = vld [vmem:[#allocation3 + $0x24] sm:$0xf]
    %v60 = vld [vmem:[#allocation3 + $0x28] sm:$0xf]
    %v61 = vld [vmem:[#allocation3 + $0x2c] sm:$0xf]
    %v62 = vld [vmem:[#allocation3 + $0x30] sm:$0xf]
    %v63 = vld [vmem:[#allocation3 + $0x34] sm:$0xf]
    %v64 = vld [vmem:[#allocation3 + $0x38] sm:$0xf]
    %v65 = vld [vmem:[#allocation3 + $0x3c] sm:$0xf]
    %v66 = vld [vmem:[%s2] sm:$0xff]
    %v67 = vld [vmem:[%s2 + $0x8] sm:$0xff]
    %v68 = vld [vmem:[%s2 + $0x10] sm:$0xff]
    %v69 = vld [vmem:[%s2 + $0x18] sm:$0xff]
    %71 = vset.pattern.permute.xlu0 0
    %72 = vperm.xlu0 %71, %v66
    %v73 = vpop.permute.xlu0 %72
    %76 = vset.pattern.permute.xlu0 0
    %77 = vperm.xlu0 %76, %v67
    %v78 = vpop.permute.xlu0 %77
    %81 = vset.pattern.permute.xlu0 0
    %82 = vperm.xlu0 %81, %v68
    %v83 = vpop.permute.xlu0 %82
    %86 = vset.pattern.permute.xlu0 0
    %87 = vperm.xlu0 %86, %v69
    %v88 = vpop.permute.xlu0 %87
    %v94 = vunpack.c.l.b16 %v46
    %v95 = vunpack.c.l.b16 %v47
    %v96 = vunpack.c.l.b16 %v48
    %v97 = vunpack.c.l.b16 %v49
    %v98 = vpack.c.b16 %v95, %v94
    %v99 = vpack.c.b16 %v97, %v96
    %v118 = vunpack.c.l.b16 %v50
    %v119 = vunpack.c.l.b16 %v51
    %v120 = vunpack.c.l.b16 %v52
    %v121 = vunpack.c.l.b16 %v53
    %v122 = vunpack.c.l.b16 %v54
    %v123 = vunpack.c.l.b16 %v55
    %v124 = vunpack.c.l.b16 %v56
    %v125 = vunpack.c.l.b16 %v57
    %v126 = vunpack.c.l.b16 %v58
    %v127 = vunpack.c.l.b16 %v59
    %v128 = vunpack.c.l.b16 %v60
    %v129 = vunpack.c.l.b16 %v61
    %v130 = vunpack.c.l.b16 %v62
    %v131 = vunpack.c.l.b16 %v63
    %v132 = vunpack.c.l.b16 %v64
    %v133 = vunpack.c.l.b16 %v65
    %v134 = vpack.c.b16 %v119, %v118
    %v135 = vpack.c.b16 %v121, %v120
    %v136 = vpack.c.b16 %v123, %v122
    %v137 = vpack.c.b16 %v125, %v124
    %v138 = vpack.c.b16 %v127, %v126
    %v139 = vpack.c.b16 %v129, %v128
    %v140 = vpack.c.b16 %v131, %v130
    %v141 = vpack.c.b16 %v133, %v132
    %150 = vmatpush.bf16.msra.mxu0 %v141
    %151 = vmatpush.bf16.msra.mxu0 %v140
    %152 = vmatpush.bf16.msra.mxu0 %v139
    %153 = vmatpush.bf16.msra.mxu0 %v138
    %154 = vmatpush.bf16.msra.mxu0 %v137
    %155 = vmatpush.bf16.msra.mxu0 %v136
    %156 = vmatpush.bf16.msra.mxu0 %v135
    %157 = vmatpush.bf16.msra.mxu0 %v134
    %158 = vmatmul.bf16.gmra.mxu0 %v98
    %v159 = vpop.f32.mrf.mxu0
    %v160 = vadd.f32 %v73, %v159
    %v161 = vpop.f32.mrf.mxu0
    %v162 = vadd.f32 %v78, %v161
    %163 = vmatmul.bf16.gmra.mxu0 %v99
    %v164 = vpop.f32.mrf.mxu0
    %v165 = vadd.f32 %v83, %v164
    %v166 = vpop.f32.mrf.mxu0
    %v167 = vadd.f32 %v88, %v166
    %168 = vdwg.mxu0
    %v169 = vmax.f32 %v160, 0.0
    %v170 = vmax.f32 %v162, 0.0
    %v171 = vmax.f32 %v165, 0.0
    %v172 = vmax.f32 %v167, 0.0
    %v173 = vld [vmem:[%s3] sm:$0xf]
    %v174 = vpack.c.bf16 %v170, %v169
    %v175 = vpack.c.bf16 %v172, %v171
    %v176 = vld [vmem:[%s4] sm:$0xff]
    %178 = vset.pattern.permute.xlu0 0
    %179 = vperm.xlu0 %178, %v176
    %v180 = vpop.permute.xlu0 %179
    %vm182 = vcmask 261120
    %v184 = vsel %vm182, %v173, 0
    %186 = vmatpush.bf16.msra.mxu0 0
    %187 = vmatpush.bf16.msra.mxu0 0
    %188 = vmatpush.bf16.msra.mxu0 0
    %189 = vmatpush.bf16.msra.mxu0 0
    %190 = vmatpush.bf16.msra.mxu0 0
    %191 = vmatpush.bf16.msra.mxu0 0
    %192 = vmatpush.bf16.msra.mxu0 %v175
    %193 = vmatpush.bf16.msra.mxu0 %v174
    %194 = vmatmul.bf16.gmra.mxu0 %v184
    %v195 = vpop.f32.mrf.mxu0
    %v196 = vadd.f32 %v180, %v195
    %v197 = vpop.f32.mrf.mxu0
    %198 = vdwg.mxu0
    %v199 = vmax.f32 %v196, 0.0
    %v200 = vld [vmem:[%s5] sm:$0xff]
    %202 = vset.pattern.permute.xlu0 0
    %203 = vperm.xlu0 %202, %v200
    %v204 = vpop.permute.xlu0 %203
    %v206 = vmul.f32 %v199, %v204
    %v207 = vrot.slane %v206, 4
    %v208 = vadd.f32 %v206, %v207
    %v209 = vrot.slane %v208, 2
    %v210 = vadd.f32 %v208, %v209
    %v211 = vrot.slane %v210, 1
    %v212 = vadd.f32 %v210, %v211
    %v213 = vld [vmem:[#allocation2] sm:$0x1]
    %215 = vset.pattern.permute.xlu0 0
    %216 = vperm.xlu0 %215, %v213
    %v217 = vpop.permute.xlu0 %216
    %v219 = vperm.slane %v217, 0
    %v220 = vadd.f32 %v212, %v219
    %221 = vst [vmem:[#allocation6] sm:$0x1] %v220
    // Predicated region
    $region34: #{tpu_custom_call.1} parent=1 // pred_check
      _
    $region35: #{tpu_custom_call.1} parent=1 // pred_check_branch
      %223 = sbr.rel (0) target = $region37
    $region36: #{tpu_custom_call.1} parent=1 // pred_region
      %225 = vsyncadd [#allocation5], 0
      %s227 = sshll.u32 [#allocation6], 4
      %s228 = int_to_ptr.vmem [resolvable:$true] %s227
      %s229 = sshll.u32 %s7, 4
      %s230 = int_to_ptr.hbm [resolvable:$true] %s229
      %232 = dma.vmem_to_hbm [thread:$0]  %s228, 16, %s230, [#allocation5]
    $region37: #{tpu_custom_call.1} parent=1 // pred_fallthru
      _
    // Predicated region
    $region38: #{tpu_custom_call.1} parent=1 // pred_check
      _
    $region39: #{tpu_custom_call.1} parent=1 // pred_check_branch
      %234 = sbr.rel (0) target = $region41
    $region40: #{tpu_custom_call.1} parent=1 // pred_region
      %236 = dma.done [#allocation5], 16
    $region41: #{tpu_custom_call.1} parent=1 // pred_fallthru
      _
    %237 = vsyncpa [#allocation4], 1
    %238 = vsyncpa [#allocation5], 1

</llo_original>
